<compile_context>
chip_gen: v6e
topology: v6e:2x2x1
jax: 0.10.0
libtpu: 0.0.40
codegen_flags: <defaults>
</compile_context>

<pallas_src>
import jax
import jax.numpy as jnp
from jax.experimental import pallas as pl
from jax.experimental.pallas import tpu as pltpu


# ----------------------------------------------------------------------------- helpers

def _cdiv(a, b):
    return (a + b - 1) // b


def _round_up(a, b):
    return _cdiv(a, b) * b


def _tpu_vmem_capacity_bytes():
    try:
        return int(pltpu.get_tpu_info().vmem_capacity_bytes)
    except Exception:
        return 64 << 20  # conservative fallback (v7x-sized)


def _generation_defaults():
    cap = _tpu_vmem_capacity_bytes()
    if cap >= (96 << 20):
        # v5e / v6e: 128 MiB VMEM, high compute/byte ridge -> big tiles.
        return dict(tm_max=1024, tn_max=1024, tk_max=1024,
                    vmem_budget=int(0.70 * cap))
    # v7x: 64 MiB physical VMEM, low ridge -> moderate tiles, tight budget.
    return dict(tm_max=768, tn_max=768, tk_max=1024,
                vmem_budget=int(0.60 * cap))


def _balanced_tile(dim, tile_max, align):
    """Tile <= tile_max that splits `dim` with minimal padding (aligned)."""
    aligned = _round_up(max(int(dim), 1), align)
    n_blocks = _cdiv(aligned, tile_max)
    tile = _round_up(_cdiv(aligned, n_blocks), align)
    return tile, n_blocks * tile  # (tile, padded_dim)


_FAST_PATH_WEIGHT_BYTES = 4 << 20  # whole-weight-resident threshold


# ----------------------------------------------------------------------------- kernels

def _new_linear_small_kernel(x_ref, w_ref, b_ref, o_ref):
    # Whole weight resident: one MXU pass, bias added in f32.
    o_ref[...] = (
        jnp.dot(x_ref[...], w_ref[...], preferred_element_type=jnp.float32)
        + b_ref[...]
    ).astype(o_ref.dtype)


def _new_linear_tiled_kernel(x_ref, w_ref, b_ref, o_ref, acc_ref):
    k = pl.program_id(2)
    prod = jnp.dot(x_ref[...], w_ref[...], preferred_element_type=jnp.float32)

    @pl.when(k == 0)
    def _init():
        acc_ref[...] = prod  # init folded into first dot (no zero-store)

    @pl.when(k != 0)
    def _accum():
        acc_ref[...] += prod

    @pl.when(k == pl.num_programs(2) - 1)
    def _finalize():
        o_ref[...] = (acc_ref[...] + b_ref[...]).astype(o_ref.dtype)


# ----------------------------------------------------------------------------- params

def init_new_linear_params(key, in_features, out_features, dtype=jnp.float32):
    """Mimic newLinear.reset_parameters(): kaiming_uniform_(a=sqrt(5)) on an
    (in, out) tensor reduces to U(-1/sqrt(out), 1/sqrt(out)) for both weight
    and bias (PyTorch's fan_in for this layout is out_features)."""
    kw, kb = jax.random.split(key)
    bound = 1.0 / (out_features ** 0.5)
    weight = jax.random.uniform(kw, (in_features, out_features), dtype, -bound, bound)
    bias = jax.random.uniform(kb, (out_features,), dtype, -bound, bound)
    return weight, bias


def prepare_new_linear_params(weight, bias=None, *, compute_dtype=jnp.bfloat16,
                              tn=None, tk=None, force_tiled=False):
    """One-time parameter prep: cast weight to compute_dtype and zero-pad it
    (and the bias) to the tile grid.  Do this at init, not per forward call."""
    K, N = weight.shape
    gen = _generation_defaults()
    w_dtype = compute_dtype if compute_dtype is not None else weight.dtype
    itemsize = jnp.dtype(w_dtype).itemsize

    k_aligned = _round_up(K, 128)
    n_aligned = _round_up(N, 128)

    use_fast = (not force_tiled
                and tn is None and tk is None
                and k_aligned * n_aligned * itemsize <= _FAST_PATH_WEIGHT_BYTES)

    if use_fast:
        tk_, k_pad = k_aligned, k_aligned
        tn_, n_pad = n_aligned, n_aligned
    else:
        if tk is None:
            tk_, k_pad = _balanced_tile(K, gen["tk_max"], 128)
        else:
            tk_ = min(_round_up(int(tk), 128), k_aligned)
            k_pad = _round_up(k_aligned, tk_)
        if tn is None:
            tn_, n_pad = _balanced_tile(N, gen["tn_max"], 128)
        else:
            tn_ = min(_round_up(int(tn), 128), n_aligned)
            n_pad = _round_up(n_aligned, tn_)

    w = weight.astype(w_dtype)
    if (k_pad, n_pad) != (K, N):
        w = jnp.pad(w, ((0, k_pad - K), (0, n_pad - N)))

    if bias is None:
        b2d = jnp.zeros((1, n_pad), jnp.float32)
    else:
        b2d = jnp.pad(bias.astype(jnp.float32), (0, n_pad - N)).reshape(1, n_pad)

    return dict(weight=w, bias2d=b2d, in_features=K, out_features=N,
                tk=tk_, tn=tn_, fast=bool(use_fast), gen=gen)


# ----------------------------------------------------------------------------- forward

def new_linear_apply(x, params, *, tm=None, out_dtype=None):
    """y = x @ weight + bias with pre-prepared params (see prepare_...)."""
    orig_shape = x.shape
    if x.ndim != 2:
        x = x.reshape(-1, orig_shape[-1])
    M, K = x.shape
    assert K == params["in_features"], (K, params["in_features"])

    out_dtype = out_dtype or x.dtype
    w = params["weight"]
    b2d = params["bias2d"]
    k_pad, n_pad = w.shape
    N = params["out_features"]
    gen = params["gen"]
    compute_dtype = w.dtype

    x = x.astype(compute_dtype)
    itemsize = jnp.dtype(compute_dtype).itemsize
    out_itemsize = jnp.dtype(out_dtype).itemsize

    if params["fast"]:
        # ---- small-layer fast path: whole weight resident, grid over M only.
        tm_max = min(gen["tm_max"], 512)
        n_m = _cdiv(M, tm_max)
        if n_m == 1 and M >= 16:
            n_m = 2  # keep both v7x TensorCores busy
        tm_ = _round_up(int(tm), 8) if tm is not None else _round_up(_cdiv(M, n_m), 8)
        m_pad = _round_up(M, tm_)
        if (m_pad, k_pad) != (M, K):
            x = jnp.pad(x, ((0, m_pad - M), (0, k_pad - K)))
        grid = (m_pad // tm_,)

        vmem_needed = (2 * tm_ * k_pad * itemsize
                       + 2 * k_pad * n_pad * itemsize
                       + 2 * n_pad * 4
                       + 2 * tm_ * n_pad * out_itemsize)
        vmem_limit = int(min(max(2 * vmem_needed, 16 << 20), gen["vmem_budget"]))

        cost = pl.CostEstimate(
            flops=2 * m_pad * n_pad * k_pad,
            transcendentals=0,
            bytes_accessed=(m_pad * k_pad + k_pad * n_pad) * itemsize
                           + m_pad * n_pad * out_itemsize,
        )

        out = pl.pallas_call(
            _new_linear_small_kernel,
            out_shape=jax.ShapeDtypeStruct((m_pad, n_pad), out_dtype),
            grid_spec=pltpu.PrefetchScalarGridSpec(
                num_scalar_prefetch=0,
                grid=grid,
                in_specs=[
                    pl.BlockSpec((tm_, k_pad), lambda i: (i, 0)),
                    pl.BlockSpec((k_pad, n_pad), lambda i: (0, 0)),
                    pl.BlockSpec((1, n_pad), lambda i: (0, 0)),
                ],
                out_specs=pl.BlockSpec((tm_, n_pad), lambda i: (i, 0)),
            ),
            compiler_params=pltpu.CompilerParams(
                dimension_semantics=("parallel",),
                vmem_limit_bytes=vmem_limit,
            ),
            cost_estimate=cost,
        )(x, w, b2d)
    else:
        # ---- tiled M/N/K path with f32 VMEM accumulator.
        tk_, tn_ = params["tk"], params["tn"]
        if tm is None:
            tm_, m_pad = _balanced_tile(M, gen["tm_max"], 8)
        else:
            tm_ = min(_round_up(int(tm), 8), _round_up(M, 8))
            m_pad = _round_up(M, tm_)
        if (m_pad, k_pad) != (M, K):
            x = jnp.pad(x, ((0, m_pad - M), (0, k_pad - K)))

        grid = (m_pad // tm_, n_pad // tn_, k_pad // tk_)
        n_i, n_j, _ = grid

        vmem_needed = (2 * (tm_ * tk_ + tk_ * tn_) * itemsize
                       + 2 * tm_ * tn_ * out_itemsize
                       + tm_ * tn_ * 4
                       + 2 * tn_ * 4)
        vmem_limit = int(min(max(2 * vmem_needed, 16 << 20), gen["vmem_budget"]))

        cost = pl.CostEstimate(
            flops=2 * m_pad * n_pad * k_pad,
            transcendentals=0,
            bytes_accessed=(m_pad * k_pad * itemsize * n_j
                           + k_pad * n_pad * itemsize * n_i
                           + m_pad * n_pad * out_itemsize),
        )

        out = pl.pallas_call(
            _new_linear_tiled_kernel,
            out_shape=jax.ShapeDtypeStruct((m_pad, n_pad), out_dtype),
            grid_spec=pltpu.PrefetchScalarGridSpec(
                num_scalar_prefetch=0,
                grid=grid,
                in_specs=[
                    pl.BlockSpec((tm_, tk_), lambda i, j, k: (i, k)),
                    pl.BlockSpec((tk_, tn_), lambda i, j, k: (k, j)),
                    pl.BlockSpec((1, tn_), lambda i, j, k: (0, j)),
                ],
                out_specs=pl.BlockSpec((tm_, tn_), lambda i, j, k: (i, j)),
                scratch_shapes=[pltpu.VMEM((tm_, tn_), jnp.float32)],
            ),
            compiler_params=pltpu.CompilerParams(
                dimension_semantics=("parallel", "parallel", "arbitrary"),
                vmem_limit_bytes=vmem_limit,
            ),
            cost_estimate=cost,
        )(x, w, b2d)
        m_pad = out.shape[0]

    if out.shape != (M, N):
        out = out[:M, :N]
    if len(orig_shape) != 2:
        out = out.reshape(*orig_shape[:-1], N)
    return out


def new_linear(x, weight, bias=None, *, compute_dtype=jnp.bfloat16,
               tm=None, tn=None, tk=None, force_tiled=False, out_dtype=None):
    """One-shot convenience wrapper. For repeated forward calls, call
    prepare_new_linear_params() once and new_linear_apply() per step."""
    params = prepare_new_linear_params(weight, bias, compute_dtype=compute_dtype,
                                       tn=tn, tk=tk, force_tiled=force_tiled)
    return new_linear_apply(x, params, tm=tm, out_dtype=out_dtype or x.dtype)


# ----------------------------------------------------------------------------- test

if __name__ == "__main__":
    key = jax.random.PRNGKey(0)
    k_x, k_p = jax.random.split(key)

    # MNIST-scale: flattened 28x28 images -> 256 hidden units.
    batch, in_features, out_features = 128, 784, 256

    x = jax.random.normal(k_x, (batch, in_features), jnp.float32)
    weight, bias = init_new_linear_params(k_p, in_features, out_features)

    # Path 1: prepared params (bf16 cast + pad hoisted), small-layer fast path.
    params = prepare_new_linear_params(weight, bias)
    y_fast = new_linear_apply(x, params)
    jax.block_until_ready(y_fast)

    # Path 2: force the tiled M/N/K kernel with small tiles to exercise the
    # accumulator / pl.when init+finalize path (grid (2, 2, 4)).
    y_tiled = new_linear(x, weight, bias, force_tiled=True, tm=64, tn=128, tk=256)
    jax.block_until_ready(y_tiled)

    # Reference: bf16 inputs, f32 accumulation (what the MXU actually does).
    y_ref = jnp.dot(x.astype(jnp.bfloat16), weight.astype(jnp.bfloat16),
                    preferred_element_type=jnp.float32) + bias

    assert y_fast.shape == (batch, out_features)
    assert y_tiled.shape == (batch, out_features)
    assert jnp.allclose(y_fast, y_ref, atol=2e-2, rtol=2e-2), float(
        jnp.max(jnp.abs(y_fast - y_ref)))
    assert jnp.allclose(y_tiled, y_ref, atol=2e-2, rtol=2e-2), float(
        jnp.max(jnp.abs(y_tiled - y_ref)))

    print("KERNEL_OK")
</pallas_src>

<mosaic_0001>
module attributes {stable_mosaic.version = 11 : i64} {
  func.func @_new_linear_small_kernel(%arg0: i32, %arg1: memref<64x896xbf16, #tpu.memory_space<vmem>>, %arg2: memref<896x256xbf16, #tpu.memory_space<vmem>>, %arg3: memref<1x256xf32, #tpu.memory_space<vmem>>, %arg4: memref<64x256xf32, #tpu.memory_space<vmem>>) attributes {dimension_semantics = [#tpu.dimension_semantics<parallel>], iteration_bounds = array<i64: 2>, scalar_prefetch = 0 : i64, scratch_operands = 0 : i64, tpu.core_type = #tpu.core_type<tc>, window_params = [{transform_indices = @transform_0, window_bounds = array<i64: 64, 896>}, {pipeline_mode = #tpu.pipeline_mode<synchronous>, transform_indices = @transform_1, window_bounds = array<i64: 896, 256>}, {pipeline_mode = #tpu.pipeline_mode<synchronous>, transform_indices = @transform_2, window_bounds = array<i64: 1, 256>}, {transform_indices = @transform_3, window_bounds = array<i64: 64, 256>}]} {
    %c0 = arith.constant 0 : index
    %c0_0 = arith.constant 0 : index
    %0 = vector.load %arg1[%c0, %c0_0] : memref<64x896xbf16, #tpu.memory_space<vmem>>, vector<64x896xbf16>
    %c0_1 = arith.constant 0 : index
    %c0_2 = arith.constant 0 : index
    %1 = vector.load %arg2[%c0_1, %c0_2] : memref<896x256xbf16, #tpu.memory_space<vmem>>, vector<896x256xbf16>
    %cst = arith.constant dense<0.000000e+00> : vector<64x256xf32>
    %2 = tpu.matmul %0, %1, %cst {dimension_numbers = #tpu.dot_dimension_numbers<[1], [0], [0], [1], [0, 0, 1, 1], [], []>} : vector<64x896xbf16>, vector<896x256xbf16>, vector<64x256xf32> -> vector<64x256xf32>
    %c0_3 = arith.constant 0 : index
    %c0_4 = arith.constant 0 : index
    %3 = vector.load %arg3[%c0_3, %c0_4] : memref<1x256xf32, #tpu.memory_space<vmem>>, vector<1x256xf32>
    %4 = vector.broadcast %3 : vector<1x256xf32> to vector<64x256xf32>
    %5 = arith.addf %2, %4 : vector<64x256xf32>
    %c0_5 = arith.constant 0 : index
    %c0_6 = arith.constant 0 : index
    %6 = vector.load %arg4[%c0_5, %c0_6] : memref<64x256xf32, #tpu.memory_space<vmem>>, vector<64x256xf32>
    tpu.vector_store %arg4[%c0_5, %c0_6], %5 {strides = array<i32>} : memref<64x256xf32, #tpu.memory_space<vmem>>, vector<64x256xf32>,
    return
  }
  func.func @transform_0(%arg0: i32) -> (i32, i32) {
    %c0_i32 = arith.constant 0 : i32
    %c0_i32_0 = arith.constant 0 : i32
    return %arg0, %c0_i32 : i32, i32
  }
  func.func @transform_1(%arg0: i32) -> (i32, i32) {
    %c0_i32 = arith.constant 0 : i32
    %c0_i32_0 = arith.constant 0 : i32
    %c0_i32_1 = arith.constant 0 : i32
    return %c0_i32, %c0_i32_0 : i32, i32
  }
  func.func @transform_2(%arg0: i32) -> (i32, i32) {
    %c0_i32 = arith.constant 0 : i32
    %c0_i32_0 = arith.constant 0 : i32
    %c0_i32_1 = arith.constant 0 : i32
    return %c0_i32, %c0_i32_0 : i32, i32
  }
  func.func @transform_3(%arg0: i32) -> (i32, i32) {
    %c0_i32 = arith.constant 0 : i32
    %c0_i32_0 = arith.constant 0 : i32
    return %arg0, %c0_i32 : i32, i32
  }
}

</mosaic_0001>

<llo_original>
// kernel: tpu_custom_call.1
$region0: #{tpu_custom_call.1}
  #allocation0 [shape = 'u32[]', space=smem, size = 0x4, offset = 0x4, fixed_abs, tag = 'smem constant byte address 0x4 - core index']
  #allocation1 [shape = 'u32[144,128]{1,0:T(1,128)}', space=vmem, size = 0x12000, scoped, tag = 'internal scratch']
  %s0 = inlined_call_operand.hbm [shape: bf16[128,896], index: 0, kind: input, shape index: {}]
  %s1 = inlined_call_operand.hbm [shape: bf16[896,256], index: 1, kind: input, shape index: {}]
  %s2 = inlined_call_operand.vmem [shape: f32[1,256], index: 2, kind: input, shape index: {}]
  %s3 = inlined_call_operand.hbm [shape: f32[128,256], index: 3, kind: output, shape index: {}]
  %s4 = sld [smem:[#allocation0]]
  $region53: #{tpu_custom_call.1} parent=0
    _
  %s6 = ssub.s32 1, %s4
  %s7 = scalar_select 0, %s6, %s4
  $region1: #{tpu_custom_call.1} parent=0
    #allocation2 [shape = 'u8[229376]{0}', space=vmem, size = 0x38000, scoped, tag = 'input window, operand 0']
    #allocation3 [shape = 's32[2]{0}', space=sflag, size = 0x8, scoped, tag = 'scoped memory for tpu_custom_call.1']
    #allocation4 [shape = 's32[2]{0}', space=sflag, size = 0x8, scoped, tag = 'scoped memory for tpu_custom_call.1']
    #allocation5 [shape = 'u8[458752]{0}', space=vmem, size = 0x70000, scoped, tag = 'input window, operand 1, single buffered']
    #allocation6 [shape = 's32[1]{0}', space=sflag, size = 0x4, scoped, tag = 'scoped memory for tpu_custom_call.1']
    #allocation7 [shape = 'u8[131072]{0}', space=vmem, size = 0x20000, scoped, tag = 'output window, operand 0']
    %8 = vsyncpa [#allocation3], 0
    %s9 = scalar_lea.sflag [#allocation3], 1
    %10 = vsyncpa %s9, 0
    %11 = vsyncpa [#allocation6], 0
    %12 = vsyncpa [#allocation4], 0
    %s13 = scalar_lea.sflag [#allocation4], 1
    %14 = vsyncpa %s13, 0
    loop: start=0, step=1, limit=4
    $region2: #{tpu_custom_call.1} parent=1 // loop_pre_header
      _
    $region3: #{tpu_custom_call.1} parent=1 // loop_header
      %s16 = sphi 0, %s20
      %p17 = scmp.ge.s32.totalorder %s16, 4
      %s26 = sphi 0, %s28
      %s29 = sphi 0, %s26
      %s30 = sphi 0, %s29
      %s46 = sphi 0, %s30
      %s50 = sphi 0, %s50
      %s52 = sphi 0, %s50
      %s53 = sphi 0, %s52
      %s67 = sphi 0, %s53
      %s71 = sphi 0, %s71
      %s73 = sphi 0, %s71
      %s74 = sphi 0, %s73
      %s88 = sphi 0, %s74
      %s94 = sphi 0, %s96
      %s97 = sphi 0, %s94
      %s98 = sphi 0, %s97
      %s114 = sphi 0, %s98
    $region4: #{tpu_custom_call.1} parent=1 // loop_header_branch
      %19 = sbr.rel (%p17) target = $region8
    $region5: #{tpu_custom_call.1} parent=1 // loop_body
      %s21 = ssub.s32 %s16, 1
      %s22 = ssub.s32 %s16, 2
      %s23 = sadd.s32 %s16, 1
      %s24 = ssub.s32 %s16, %s23
      %p25 = scmp.eq.s32.totalorder %s24, 0
      %s27 = sadd.s32 %s26, 1
      %s28 = scalar_select %p25, %s26, %s27
      %p31 = pneg %p25
      %p32 = scmp.eq.s32.totalorder %s16, 1
      %p33 = por %p31, %p32
      %p34 = scmp.ne.s32.totalorder %s26, %s29
      %p35 = scmp.eq.s32.totalorder %s16, 0
      %p36 = por %p34, %p35
      %p37 = scmp.ne.s32.totalorder %s26, %s29
      %p38 = scmp.eq.s32.totalorder %s21, 1
      %p39 = por %p37, %p38
      %p40 = scmp.ne.s32.totalorder %s29, %s30
      %p41 = scmp.eq.s32.totalorder %s21, 0
      %p42 = por %p40, %p41
      %p43 = scmp.ne.s32.totalorder %s29, %s30
      %p44 = scmp.eq.s32.totalorder %s22, 1
      %p45 = por %p43, %p44
      %p47 = scmp.ne.s32.totalorder %s30, %s46
      %p48 = scmp.eq.s32.totalorder %s22, 0
      %p49 = por %p47, %p48
      %s51 = sadd.s32 %s50, 1
      %p54 = scmp.eq.s32.totalorder %s16, 1
      %p55 = scmp.ne.s32.totalorder %s50, %s52
      %p56 = scmp.eq.s32.totalorder %s16, 0
      %p57 = por %p55, %p56
      %p58 = scmp.ne.s32.totalorder %s50, %s52
      %p59 = scmp.eq.s32.totalorder %s21, 1
      %p60 = por %p58, %p59
      %p61 = scmp.ne.s32.totalorder %s52, %s53
      %p62 = scmp.eq.s32.totalorder %s21, 0
      %p63 = por %p61, %p62
      %p64 = scmp.ne.s32.totalorder %s52, %s53
      %p65 = scmp.eq.s32.totalorder %s22, 1
      %p66 = por %p64, %p65
      %p68 = scmp.ne.s32.totalorder %s53, %s67
      %p69 = scmp.eq.s32.totalorder %s22, 0
      %p70 = por %p68, %p69
      %s72 = sadd.s32 %s71, 1
      %p75 = scmp.eq.s32.totalorder %s16, 1
      %p76 = scmp.ne.s32.totalorder %s71, %s73
      %p77 = scmp.eq.s32.totalorder %s16, 0
      %p78 = por %p76, %p77
      %p79 = scmp.ne.s32.totalorder %s71, %s73
      %p80 = scmp.eq.s32.totalorder %s21, 1
      %p81 = por %p79, %p80
      %p82 = scmp.ne.s32.totalorder %s73, %s74
      %p83 = scmp.eq.s32.totalorder %s21, 0
      %p84 = por %p82, %p83
      %p85 = scmp.ne.s32.totalorder %s73, %s74
      %p86 = scmp.eq.s32.totalorder %s22, 1
      %p87 = por %p85, %p86
      %p89 = scmp.ne.s32.totalorder %s74, %s88
      %p90 = scmp.eq.s32.totalorder %s22, 0
      %p91 = por %p89, %p90
      %s92 = ssub.s32 %s16, %s23
      %p93 = scmp.eq.s32.totalorder %s92, 0
      %s95 = sadd.s32 %s94, 1
      %s96 = scalar_select %p93, %s94, %s95
      %p99 = pneg %p93
      %p100 = scmp.eq.s32.totalorder %s16, 1
      %p101 = por %p99, %p100
      %p102 = scmp.ne.s32.totalorder %s94, %s97
      %p103 = scmp.eq.s32.totalorder %s16, 0
      %p104 = por %p102, %p103
      %p105 = scmp.ne.s32.totalorder %s94, %s97
      %p106 = scmp.eq.s32.totalorder %s21, 1
      %p107 = por %p105, %p106
      %p108 = scmp.ne.s32.totalorder %s97, %s98
      %p109 = scmp.eq.s32.totalorder %s21, 0
      %p110 = por %p108, %p109
      %p111 = scmp.ne.s32.totalorder %s97, %s98
      %p112 = scmp.eq.s32.totalorder %s22, 1
      %p113 = por %p111, %p112
      %p115 = scmp.ne.s32.totalorder %s98, %s114
      %p116 = scmp.eq.s32.totalorder %s22, 0
      %p117 = por %p115, %p116
      %p118 = scmp.le.s32.totalorder 1, %s16
      %p119 = scmp.lt.s32.totalorder %s16, 3
      %p120 = pnand %p118, %p119
      %p121 = pneg %p120
      // Predicated region
      $region9: #{tpu_custom_call.1} parent=5 // pred_check
        _
      $region10: #{tpu_custom_call.1} parent=5 // pred_check_branch
        %123 = sbr.rel (%p120) target = $region12
      $region11: #{tpu_custom_call.1} parent=5 // pred_region
        %s124 = ssub.s32 %s16, 1
        // Predicated region
        $region13: #{tpu_custom_call.1} parent=11 // pred_check
          %p125 = pneg %p63
        $region14: #{tpu_custom_call.1} parent=11 // pred_check_branch
          %127 = sbr.rel (%p125) target = $region16
        $region15: #{tpu_custom_call.1} parent=11 // pred_region
          %s129 = ssub.s32 14336, 14336
          %130 = vsyncadd [#allocation6], %s129
          %s131 = sshll.u32 [#allocation5], 4
          %s132 = int_to_ptr.vmem [resolvable:$true] %s131
          %137 = dma.hbm_to_vmem [thread:$0]  %s1, 14336, %s132, [#allocation6], 128, 128, 8
        $region16: #{tpu_custom_call.1} parent=11 // pred_fallthru
          _
        // Predicated region
        $region17: #{tpu_custom_call.1} parent=11 // pred_check
          %p138 = pneg %p84
        $region18: #{tpu_custom_call.1} parent=11 // pred_check_branch
          %140 = sbr.rel (%p138) target = $region20
        $region19: #{tpu_custom_call.1} parent=11 // pred_region
          _
        $region20: #{tpu_custom_call.1} parent=11 // pred_fallthru
          _
      $region12: #{tpu_custom_call.1} parent=5 // pred_fallthru
        _
      %p141 = scmp.lt.s32.totalorder %s16, 2
      // Predicated region
      $region21: #{tpu_custom_call.1} parent=5 // pred_check
        %p142 = pneg %p141
      $region22: #{tpu_custom_call.1} parent=5 // pred_check_branch
        %144 = sbr.rel (%p142) target = $region24
      $region23: #{tpu_custom_call.1} parent=5 // pred_region
        // Predicated region
        $region25: #{tpu_custom_call.1} parent=23 // pred_check
          %p145 = pneg %p36
        $region26: #{tpu_custom_call.1} parent=23 // pred_check_branch
          %147 = sbr.rel (%p145) target = $region28
        $region27: #{tpu_custom_call.1} parent=23 // pred_region
          %s148 = sand.u32 %s26, 1
          %s149 = scalar_lea.sflag [#allocation3], %s148
          %s150 = sand.u32 %s26, 1
          %s151 = smul.addr %s150, 224
          %s152 = scalar_lea.vmem [#allocation2], %s151
          %s153 = smul.u32 8, %s16
          %s155 = ssub.s32 3584, 3584
          %156 = vsyncadd %s149, %s155
          %s157 = smul.addr %s153, 7
          %s158 = smul.addr %s157, 64
          %s159 = scalar_lea.hbm %s0, %s158
          %s160 = sshll.u32 %s152, 4
          %s161 = int_to_ptr.vmem [resolvable:$true] %s160
          %166 = dma.hbm_to_vmem [thread:$0]  %s159, 3584, %s161, %s149, 448, 448, 28
        $region28: #{tpu_custom_call.1} parent=23 // pred_fallthru
          _
      $region24: #{tpu_custom_call.1} parent=5 // pred_fallthru
        _
      %p167 = scmp.le.s32.totalorder 1, %s16
      %p168 = scmp.lt.s32.totalorder %s16, 3
      %p169 = pnand %p167, %p168
      %p170 = pneg %p169
      // Predicated region
      $region29: #{tpu_custom_call.1} parent=5 // pred_check
        _
      $region30: #{tpu_custom_call.1} parent=5 // pred_check_branch
        %172 = sbr.rel (%p169) target = $region32
      $region31: #{tpu_custom_call.1} parent=5 // pred_region
        %s173 = ssub.s32 %s16, 1
        %s174 = sand.u32 %s29, 1
        %s175 = scalar_lea.sflag [#allocation3], %s174
        %s176 = sand.u32 %s29, 1
        %s177 = smul.addr %s176, 224
        %s178 = scalar_lea.vmem [#allocation2], %s177
        // Predicated region
        $region33: #{tpu_custom_call.1} parent=31 // pred_check
          %p179 = pneg %p42
        $region34: #{tpu_custom_call.1} parent=31 // pred_check_branch
          %181 = sbr.rel (%p179) target = $region36
        $region35: #{tpu_custom_call.1} parent=31 // pred_region
          %182 = dma.done %s175, 3584
        $region36: #{tpu_custom_call.1} parent=31 // pred_fallthru
          _
        // Predicated region
        $region37: #{tpu_custom_call.1} parent=31 // pred_check
          %p183 = pneg %p63
        $region38: #{tpu_custom_call.1} parent=31 // pred_check_branch
          %185 = sbr.rel (%p183) target = $region40
        $region39: #{tpu_custom_call.1} parent=31 // pred_region
          %186 = dma.done [#allocation6], 14336
        $region40: #{tpu_custom_call.1} parent=31 // pred_fallthru
          _
        %s187 = sand.u32 %s29, 1
        %s188 = scalar_lea.sflag [#allocation3], %s187
        %s189 = sand.u32 %s29, 1
        %s190 = smul.addr %s189, 224
        %s191 = scalar_lea.vmem [#allocation2], %s190
        %p192 = pneg %p42
        %p193 = pneg %p39
        %p194 = pneg %p63
        %p195 = pneg %p60
        %p196 = pneg %p84
        %p197 = pneg %p81
        %p198 = pneg %p110
        %p199 = pneg %p107
        %s200 = sand.u32 %s97, 1
        %s201 = scalar_lea.sflag [#allocation4], %s200
        %s202 = sand.u32 %s97, 1
        %s203 = smul.addr %s202, 128
        %s204 = scalar_lea.vmem [#allocation7], %s203
        %s205 = smul.u32 8, %s21
        %s206 = smul.u32 8, %s21
        %v208 = vld [vmem:[%s178] sm:$0xff]
        %v209 = vld [vmem:[%s178 + $0x8] sm:$0xff]
        %v210 = vld [vmem:[%s178 + $0x10] sm:$0xff]
        %v211 = vld [vmem:[%s178 + $0x18] sm:$0xf]
        %v212 = vld [vmem:[%s178 + $0x1c] sm:$0xff]
        %v213 = vld [vmem:[%s178 + $0x24] sm:$0xff]
        %v214 = vld [vmem:[%s178 + $0x2c] sm:$0xff]
        %v215 = vld [vmem:[%s178 + $0x34] sm:$0xf]
        %v216 = vld [vmem:[%s178 + $0x38] sm:$0xff]
        %v217 = vld [vmem:[%s178 + $0x40] sm:$0xff]
        %v218 = vld [vmem:[%s178 + $0x48] sm:$0xff]
        %v219 = vld [vmem:[%s178 + $0x50] sm:$0xf]
        %v220 = vld [vmem:[%s178 + $0x54] sm:$0xff]
        %v221 = vld [vmem:[%s178 + $0x5c] sm:$0xff]
        %v222 = vld [vmem:[%s178 + $0x64] sm:$0xff]
        %v223 = vld [vmem:[%s178 + $0x6c] sm:$0xf]
        %v224 = vld [vmem:[%s178 + $0x70] sm:$0xff]
        %v225 = vld [vmem:[%s178 + $0x78] sm:$0xff]
        %v226 = vld [vmem:[%s178 + $0x80] sm:$0xff]
        %v227 = vld [vmem:[%s178 + $0x88] sm:$0xf]
        %v228 = vld [vmem:[%s178 + $0x8c] sm:$0xff]
        %v229 = vld [vmem:[%s178 + $0x94] sm:$0xff]
        %v230 = vld [vmem:[%s178 + $0x9c] sm:$0xff]
        %v231 = vld [vmem:[%s178 + $0xa4] sm:$0xf]
        %v232 = vld [vmem:[%s178 + $0xa8] sm:$0xff]
        %v233 = vld [vmem:[%s178 + $0xb0] sm:$0xff]
        %v234 = vld [vmem:[%s178 + $0xb8] sm:$0xff]
        %v235 = vld [vmem:[%s178 + $0xc0] sm:$0xf]
        %v236 = vld [vmem:[%s178 + $0xc4] sm:$0xff]
        %v237 = vld [vmem:[%s178 + $0xcc] sm:$0xff]
        %v238 = vld [vmem:[%s178 + $0xd4] sm:$0xff]
        %v239 = vld [vmem:[%s178 + $0xdc] sm:$0xf]
        %v240 = vld [vmem:[#allocation5] sm:$0xff]
        %v241 = vld [vmem:[#allocation5 + $0x8] sm:$0xff]
        %v242 = vld [vmem:[#allocation5 + $0x10] sm:$0xff]
        %v243 = vld [vmem:[#allocation5 + $0x18] sm:$0xff]
        %v244 = vld [vmem:[#allocation5 + $0x20] sm:$0xff]
        %v245 = vld [vmem:[#allocation5 + $0x28] sm:$0xff]
        %v246 = vld [vmem:[#allocation5 + $0x30] sm:$0xff]
        %v247 = vld [vmem:[#allocation5 + $0x38] sm:$0xff]
        %v248 = vld [vmem:[#allocation5 + $0x40] sm:$0xff]
        %v249 = vld [vmem:[#allocation5 + $0x48] sm:$0xff]
        %v250 = vld [vmem:[#allocation5 + $0x50] sm:$0xff]
        %v251 = vld [vmem:[#allocation5 + $0x58] sm:$0xff]
        %v252 = vld [vmem:[#allocation5 + $0x60] sm:$0xff]
        %v253 = vld [vmem:[#allocation5 + $0x68] sm:$0xff]
        %v254 = vld [vmem:[#allocation5 + $0x70] sm:$0xff]
        %v255 = vld [vmem:[#allocation5 + $0x78] sm:$0xff]
        %v256 = vld [vmem:[#allocation5 + $0x80] sm:$0xff]
        %v257 = vld [vmem:[#allocation5 + $0x88] sm:$0xff]
        %v258 = vld [vmem:[#allocation5 + $0x90] sm:$0xff]
        %v259 = vld [vmem:[#allocation5 + $0x98] sm:$0xff]
        %v260 = vld [vmem:[#allocation5 + $0xa0] sm:$0xff]
        %v261 = vld [vmem:[#allocation5 + $0xa8] sm:$0xff]
        %v262 = vld [vmem:[#allocation5 + $0xb0] sm:$0xff]
        %v263 = vld [vmem:[#allocation5 + $0xb8] sm:$0xff]
        %v264 = vld [vmem:[#allocation5 + $0xc0] sm:$0xff]
        %v265 = vld [vmem:[#allocation5 + $0xc8] sm:$0xff]
        %v266 = vld [vmem:[#allocation5 + $0xd0] sm:$0xff]
        %v267 = vld [vmem:[#allocation5 + $0xd8] sm:$0xff]
        %v268 = vld [vmem:[#allocation5 + $0xe0] sm:$0xff]
        %v269 = vld [vmem:[#allocation5 + $0xe8] sm:$0xff]
        %v270 = vld [vmem:[#allocation5 + $0xf0] sm:$0xff]
        %v271 = vld [vmem:[#allocation5 + $0xf8] sm:$0xff]
        %v272 = vld [vmem:[#allocation5 + $0x100] sm:$0xff]
        %v273 = vld [vmem:[#allocation5 + $0x108] sm:$0xff]
        %v274 = vld [vmem:[#allocation5 + $0x110] sm:$0xff]
        %v275 = vld [vmem:[#allocation5 + $0x118] sm:$0xff]
        %v276 = vld [vmem:[#allocation5 + $0x120] sm:$0xff]
        %v277 = vld [vmem:[#allocation5 + $0x128] sm:$0xff]
        %v278 = vld [vmem:[#allocation5 + $0x130] sm:$0xff]
        %v279 = vld [vmem:[#allocation5 + $0x138] sm:$0xff]
        %v280 = vld [vmem:[#allocation5 + $0x140] sm:$0xff]
        %v281 = vld [vmem:[#allocation5 + $0x148] sm:$0xff]
        %v282 = vld [vmem:[#allocation5 + $0x150] sm:$0xff]
        %v283 = vld [vmem:[#allocation5 + $0x158] sm:$0xff]
        %v284 = vld [vmem:[#allocation5 + $0x160] sm:$0xff]
        %v285 = vld [vmem:[#allocation5 + $0x168] sm:$0xff]
        %v286 = vld [vmem:[#allocation5 + $0x170] sm:$0xff]
        %v287 = vld [vmem:[#allocation5 + $0x178] sm:$0xff]
        %v288 = vld [vmem:[#allocation5 + $0x180] sm:$0xff]
        %v289 = vld [vmem:[#allocation5 + $0x188] sm:$0xff]
        %v290 = vld [vmem:[#allocation5 + $0x190] sm:$0xff]
        %v291 = vld [vmem:[#allocation5 + $0x198] sm:$0xff]
        %v292 = vld [vmem:[#allocation5 + $0x1a0] sm:$0xff]
        %v293 = vld [vmem:[#allocation5 + $0x1a8] sm:$0xff]
        %v294 = vld [vmem:[#allocation5 + $0x1b0] sm:$0xff]
        %v295 = vld [vmem:[#allocation5 + $0x1b8] sm:$0xff]
        %v296 = vld [vmem:[#allocation5 + $0x1c0] sm:$0xff]
        %v297 = vld [vmem:[#allocation5 + $0x1c8] sm:$0xff]
        %v298 = vld [vmem:[#allocation5 + $0x1d0] sm:$0xff]
        %v299 = vld [vmem:[#allocation5 + $0x1d8] sm:$0xff]
        %v300 = vld [vmem:[#allocation5 + $0x1e0] sm:$0xff]
        %v301 = vld [vmem:[#allocation5 + $0x1e8] sm:$0xff]
        %v302 = vld [vmem:[#allocation5 + $0x1f0] sm:$0xff]
        %v303 = vld [vmem:[#allocation5 + $0x1f8] sm:$0xff]
        %v304 = vld [vmem:[#allocation5 + $0x200] sm:$0xff]
        %v305 = vld [vmem:[#allocation5 + $0x208] sm:$0xff]
        %v306 = vld [vmem:[#allocation5 + $0x210] sm:$0xff]
        %v307 = vld [vmem:[#allocation5 + $0x218] sm:$0xff]
        %v308 = vld [vmem:[#allocation5 + $0x220] sm:$0xff]
        %v309 = vld [vmem:[#allocation5 + $0x228] sm:$0xff]
        %v310 = vld [vmem:[#allocation5 + $0x230] sm:$0xff]
        %v311 = vld [vmem:[#allocation5 + $0x238] sm:$0xff]
        %v312 = vld [vmem:[#allocation5 + $0x240] sm:$0xff]
        %v313 = vld [vmem:[#allocation5 + $0x248] sm:$0xff]
        %v314 = vld [vmem:[#allocation5 + $0x250] sm:$0xff]
        %v315 = vld [vmem:[#allocation5 + $0x258] sm:$0xff]
        %v316 = vld [vmem:[#allocation5 + $0x260] sm:$0xff]
        %v317 = vld [vmem:[#allocation5 + $0x268] sm:$0xff]
        %v318 = vld [vmem:[#allocation5 + $0x270] sm:$0xff]
        %v319 = vld [vmem:[#allocation5 + $0x278] sm:$0xff]
        %v320 = vld [vmem:[#allocation5 + $0x280] sm:$0xff]
        %v321 = vld [vmem:[#allocation5 + $0x288] sm:$0xff]
        %v322 = vld [vmem:[#allocation5 + $0x290] sm:$0xff]
        %v323 = vld [vmem:[#allocation5 + $0x298] sm:$0xff]
        %v324 = vld [vmem:[#allocation5 + $0x2a0] sm:$0xff]
        %v325 = vld [vmem:[#allocation5 + $0x2a8] sm:$0xff]
        %v326 = vld [vmem:[#allocation5 + $0x2b0] sm:$0xff]
        %v327 = vld [vmem:[#allocation5 + $0x2b8] sm:$0xff]
        %v328 = vld [vmem:[#allocation5 + $0x2c0] sm:$0xff]
        %v329 = vld [vmem:[#allocation5 + $0x2c8] sm:$0xff]
        %v330 = vld [vmem:[#allocation5 + $0x2d0] sm:$0xff]
        %v331 = vld [vmem:[#allocation5 + $0x2d8] sm:$0xff]
        %v332 = vld [vmem:[#allocation5 + $0x2e0] sm:$0xff]
        %v333 = vld [vmem:[#allocation5 + $0x2e8] sm:$0xff]
        %v334 = vld [vmem:[#allocation5 + $0x2f0] sm:$0xff]
        %v335 = vld [vmem:[#allocation5 + $0x2f8] sm:$0xff]
        %v336 = vld [vmem:[#allocation5 + $0x300] sm:$0xff]
        %v337 = vld [vmem:[#allocation5 + $0x308] sm:$0xff]
        %v338 = vld [vmem:[#allocation5 + $0x310] sm:$0xff]
        %v339 = vld [vmem:[#allocation5 + $0x318] sm:$0xff]
        %v340 = vld [vmem:[#allocation5 + $0x320] sm:$0xff]
        %v341 = vld [vmem:[#allocation5 + $0x328] sm:$0xff]
        %v342 = vld [vmem:[#allocation5 + $0x330] sm:$0xff]
        %v343 = vld [vmem:[#allocation5 + $0x338] sm:$0xff]
        %v344 = vld [vmem:[#allocation5 + $0x340] sm:$0xff]
        %v345 = vld [vmem:[#allocation5 + $0x348] sm:$0xff]
        %v346 = vld [vmem:[#allocation5 + $0x350] sm:$0xff]
        %v347 = vld [vmem:[#allocation5 + $0x358] sm:$0xff]
        %v348 = vld [vmem:[#allocation5 + $0x360] sm:$0xff]
        %v349 = vld [vmem:[#allocation5 + $0x368] sm:$0xff]
        %v350 = vld [vmem:[#allocation5 + $0x370] sm:$0xff]
        %v351 = vld [vmem:[#allocation5 + $0x378] sm:$0xff]
        %v352 = vld [vmem:[%s2] sm:$0x3]
        %v354 = vlaneseq
        %v355 = vshrl.u32 %v354, 7
        %v356 = vsub.s32 0, %v355
        %v357 = vrot.slane %v352, %v356
        %v358 = vlaneseq
        %v359 = vshrl.u32 %v358, 7
        %v360 = vsub.s32 1, %v359
        %v361 = vrot.slane %v352, %v360
        %v396 = vunpack.c.l.b16 %v208
        %v397 = vunpack.c.h.b16 %v208
        %v398 = vunpack.c.l.b16 %v209
        %v399 = vunpack.c.h.b16 %v209
        %v400 = vunpack.c.l.b16 %v210
        %v401 = vunpack.c.h.b16 %v210
        %v402 = vunpack.c.l.b16 %v211
        %v403 = vunpack.c.l.b16 %v212
        %v404 = vunpack.c.h.b16 %v212
        %v405 = vunpack.c.l.b16 %v213
        %v406 = vunpack.c.h.b16 %v213
        %v407 = vunpack.c.l.b16 %v214
        %v408 = vunpack.c.h.b16 %v214
        %v409 = vunpack.c.l.b16 %v215
        %v410 = vunpack.c.l.b16 %v216
        %v411 = vunpack.c.h.b16 %v216
        %v412 = vunpack.c.l.b16 %v217
        %v413 = vunpack.c.h.b16 %v217
        %v414 = vunpack.c.l.b16 %v218
        %v415 = vunpack.c.h.b16 %v218
        %v416 = vunpack.c.l.b16 %v219
        %v417 = vunpack.c.l.b16 %v220
        %v418 = vunpack.c.h.b16 %v220
        %v419 = vunpack.c.l.b16 %v221
        %v420 = vunpack.c.h.b16 %v221
        %v421 = vunpack.c.l.b16 %v222
        %v422 = vunpack.c.h.b16 %v222
        %v423 = vunpack.c.l.b16 %v223
        %v424 = vunpack.c.l.b16 %v224
        %v425 = vunpack.c.h.b16 %v224
        %v426 = vunpack.c.l.b16 %v225
        %v427 = vunpack.c.h.b16 %v225
        %v428 = vunpack.c.l.b16 %v226
        %v429 = vunpack.c.h.b16 %v226
        %v430 = vunpack.c.l.b16 %v227
        %v431 = vunpack.c.l.b16 %v228
        %v432 = vunpack.c.h.b16 %v228
        %v433 = vunpack.c.l.b16 %v229
        %v434 = vunpack.c.h.b16 %v229
        %v435 = vunpack.c.l.b16 %v230
        %v436 = vunpack.c.h.b16 %v230
        %v437 = vunpack.c.l.b16 %v231
        %v438 = vunpack.c.l.b16 %v232
        %v439 = vunpack.c.h.b16 %v232
        %v440 = vunpack.c.l.b16 %v233
        %v441 = vunpack.c.h.b16 %v233
        %v442 = vunpack.c.l.b16 %v234
        %v443 = vunpack.c.h.b16 %v234
        %v444 = vunpack.c.l.b16 %v235
        %v445 = vunpack.c.l.b16 %v236
        %v446 = vunpack.c.h.b16 %v236
        %v447 = vunpack.c.l.b16 %v237
        %v448 = vunpack.c.h.b16 %v237
        %v449 = vunpack.c.l.b16 %v238
        %v450 = vunpack.c.h.b16 %v238
        %v451 = vunpack.c.l.b16 %v239
        %v452 = vpack.c.b16 %v403, %v396
        %v453 = vpack.c.b16 %v404, %v397
        %v454 = vpack.c.b16 %v405, %v398
        %v455 = vpack.c.b16 %v406, %v399
        %v456 = vpack.c.b16 %v407, %v400
        %v457 = vpack.c.b16 %v408, %v401
        %v458 = vpack.c.b16 %v409, %v402
        %v459 = vpack.c.b16 %v417, %v410
        %v460 = vpack.c.b16 %v418, %v411
        %v461 = vpack.c.b16 %v419, %v412
        %v462 = vpack.c.b16 %v420, %v413
        %v463 = vpack.c.b16 %v421, %v414
        %v464 = vpack.c.b16 %v422, %v415
        %v465 = vpack.c.b16 %v423, %v416
        %v466 = vpack.c.b16 %v431, %v424
        %v467 = vpack.c.b16 %v432, %v425
        %v468 = vpack.c.b16 %v433, %v426
        %v469 = vpack.c.b16 %v434, %v427
        %v470 = vpack.c.b16 %v435, %v428
        %v471 = vpack.c.b16 %v436, %v429
        %v472 = vpack.c.b16 %v437, %v430
        %v473 = vpack.c.b16 %v445, %v438
        %v474 = vpack.c.b16 %v446, %v439
        %v475 = vpack.c.b16 %v447, %v440
        %v476 = vpack.c.b16 %v448, %v441
        %v477 = vpack.c.b16 %v449, %v442
        %v478 = vpack.c.b16 %v450, %v443
        %v479 = vpack.c.b16 %v451, %v444
        %v620 = vunpack.c.l.b16 %v240
        %v621 = vunpack.c.h.b16 %v240
        %v622 = vunpack.c.l.b16 %v241
        %v623 = vunpack.c.h.b16 %v241
        %v624 = vunpack.c.l.b16 %v242
        %v625 = vunpack.c.h.b16 %v242
        %v626 = vunpack.c.l.b16 %v243
        %v627 = vunpack.c.h.b16 %v243
        %v628 = vunpack.c.l.b16 %v244
        %v629 = vunpack.c.h.b16 %v244
        %v630 = vunpack.c.l.b16 %v245
        %v631 = vunpack.c.h.b16 %v245
        %v632 = vunpack.c.l.b16 %v246
        %v633 = vunpack.c.h.b16 %v246
        %v634 = vunpack.c.l.b16 %v247
        %v635 = vunpack.c.h.b16 %v247
        %v636 = vunpack.c.l.b16 %v248
        %v637 = vunpack.c.h.b16 %v248
        %v638 = vunpack.c.l.b16 %v249
        %v639 = vunpack.c.h.b16 %v249
        %v640 = vunpack.c.l.b16 %v250
        %v641 = vunpack.c.h.b16 %v250
        %v642 = vunpack.c.l.b16 %v251
        %v643 = vunpack.c.h.b16 %v251
        %v644 = vunpack.c.l.b16 %v252
        %v645 = vunpack.c.h.b16 %v252
        %v646 = vunpack.c.l.b16 %v253
        %v647 = vunpack.c.h.b16 %v253
        %v648 = vunpack.c.l.b16 %v254
        %v649 = vunpack.c.h.b16 %v254
        %v650 = vunpack.c.l.b16 %v255
        %v651 = vunpack.c.h.b16 %v255
        %v652 = vunpack.c.l.b16 %v256
        %v653 = vunpack.c.h.b16 %v256
        %v654 = vunpack.c.l.b16 %v257
        %v655 = vunpack.c.h.b16 %v257
        %v656 = vunpack.c.l.b16 %v258
        %v657 = vunpack.c.h.b16 %v258
        %v658 = vunpack.c.l.b16 %v259
        %v659 = vunpack.c.h.b16 %v259
        %v660 = vunpack.c.l.b16 %v260
        %v661 = vunpack.c.h.b16 %v260
        %v662 = vunpack.c.l.b16 %v261
        %v663 = vunpack.c.h.b16 %v261
        %v664 = vunpack.c.l.b16 %v262
        %v665 = vunpack.c.h.b16 %v262
        %v666 = vunpack.c.l.b16 %v263
        %v667 = vunpack.c.h.b16 %v263
        %v668 = vunpack.c.l.b16 %v264
        %v669 = vunpack.c.h.b16 %v264
        %v670 = vunpack.c.l.b16 %v265
        %v671 = vunpack.c.h.b16 %v265
        %v672 = vunpack.c.l.b16 %v266
        %v673 = vunpack.c.h.b16 %v266
        %v674 = vunpack.c.l.b16 %v267
        %v675 = vunpack.c.h.b16 %v267
        %v676 = vunpack.c.l.b16 %v268
        %v677 = vunpack.c.h.b16 %v268
        %v678 = vunpack.c.l.b16 %v269
        %v679 = vunpack.c.h.b16 %v269
        %v680 = vunpack.c.l.b16 %v270
        %v681 = vunpack.c.h.b16 %v270
        %v682 = vunpack.c.l.b16 %v271
        %v683 = vunpack.c.h.b16 %v271
        %v684 = vunpack.c.l.b16 %v272
        %v685 = vunpack.c.h.b16 %v272
        %v686 = vunpack.c.l.b16 %v273
        %v687 = vunpack.c.h.b16 %v273
        %v688 = vunpack.c.l.b16 %v274
        %v689 = vunpack.c.h.b16 %v274
        %v690 = vunpack.c.l.b16 %v275
        %v691 = vunpack.c.h.b16 %v275
        %v692 = vunpack.c.l.b16 %v276
        %v693 = vunpack.c.h.b16 %v276
        %v694 = vunpack.c.l.b16 %v277
        %v695 = vunpack.c.h.b16 %v277
        %v696 = vunpack.c.l.b16 %v278
        %v697 = vunpack.c.h.b16 %v278
        %v698 = vunpack.c.l.b16 %v279
        %v699 = vunpack.c.h.b16 %v279
        %v700 = vunpack.c.l.b16 %v280
        %v701 = vunpack.c.h.b16 %v280
        %v702 = vunpack.c.l.b16 %v281
        %v703 = vunpack.c.h.b16 %v281
        %v704 = vunpack.c.l.b16 %v282
        %v705 = vunpack.c.h.b16 %v282
        %v706 = vunpack.c.l.b16 %v283
        %v707 = vunpack.c.h.b16 %v283
        %v708 = vunpack.c.l.b16 %v284
        %v709 = vunpack.c.h.b16 %v284
        %v710 = vunpack.c.l.b16 %v285
        %v711 = vunpack.c.h.b16 %v285
        %v712 = vunpack.c.l.b16 %v286
        %v713 = vunpack.c.h.b16 %v286
        %v714 = vunpack.c.l.b16 %v287
        %v715 = vunpack.c.h.b16 %v287
        %v716 = vunpack.c.l.b16 %v288
        %v717 = vunpack.c.h.b16 %v288
        %v718 = vunpack.c.l.b16 %v289
        %v719 = vunpack.c.h.b16 %v289
        %v720 = vunpack.c.l.b16 %v290
        %v721 = vunpack.c.h.b16 %v290
        %v722 = vunpack.c.l.b16 %v291
        %v723 = vunpack.c.h.b16 %v291
        %v724 = vunpack.c.l.b16 %v292
        %v725 = vunpack.c.h.b16 %v292
        %v726 = vunpack.c.l.b16 %v293
        %v727 = vunpack.c.h.b16 %v293
        %v728 = vunpack.c.l.b16 %v294
        %v729 = vunpack.c.h.b16 %v294
        %v730 = vunpack.c.l.b16 %v295
        %v731 = vunpack.c.h.b16 %v295
        %v732 = vunpack.c.l.b16 %v296
        %v733 = vunpack.c.h.b16 %v296
        %v734 = vunpack.c.l.b16 %v297
        %v735 = vunpack.c.h.b16 %v297
        %v736 = vunpack.c.l.b16 %v298
        %v737 = vunpack.c.h.b16 %v298
        %v738 = vunpack.c.l.b16 %v299
        %v739 = vunpack.c.h.b16 %v299
        %v740 = vunpack.c.l.b16 %v300
        %v741 = vunpack.c.h.b16 %v300
        %v742 = vunpack.c.l.b16 %v301
        %v743 = vunpack.c.h.b16 %v301
        %v744 = vunpack.c.l.b16 %v302
        %v745 = vunpack.c.h.b16 %v302
        %v746 = vunpack.c.l.b16 %v303
        %v747 = vunpack.c.h.b16 %v303
        %v748 = vunpack.c.l.b16 %v304
        %v749 = vunpack.c.h.b16 %v304
        %v750 = vunpack.c.l.b16 %v305
        %v751 = vunpack.c.h.b16 %v305
        %v752 = vunpack.c.l.b16 %v306
        %v753 = vunpack.c.h.b16 %v306
        %v754 = vunpack.c.l.b16 %v307
        %v755 = vunpack.c.h.b16 %v307
        %v756 = vunpack.c.l.b16 %v308
        %v757 = vunpack.c.h.b16 %v308
        %v758 = vunpack.c.l.b16 %v309
        %v759 = vunpack.c.h.b16 %v309
        %v760 = vunpack.c.l.b16 %v310
        %v761 = vunpack.c.h.b16 %v310
        %v762 = vunpack.c.l.b16 %v311
        %v763 = vunpack.c.h.b16 %v311
        %v764 = vunpack.c.l.b16 %v312
        %v765 = vunpack.c.h.b16 %v312
        %v766 = vunpack.c.l.b16 %v313
        %v767 = vunpack.c.h.b16 %v313
        %v768 = vunpack.c.l.b16 %v314
        %v769 = vunpack.c.h.b16 %v314
        %v770 = vunpack.c.l.b16 %v315
        %v771 = vunpack.c.h.b16 %v315
        %v772 = vunpack.c.l.b16 %v316
        %v773 = vunpack.c.h.b16 %v316
        %v774 = vunpack.c.l.b16 %v317
        %v775 = vunpack.c.h.b16 %v317
        %v776 = vunpack.c.l.b16 %v318
        %v777 = vunpack.c.h.b16 %v318
        %v778 = vunpack.c.l.b16 %v319
        %v779 = vunpack.c.h.b16 %v319
        %v780 = vunpack.c.l.b16 %v320
        %v781 = vunpack.c.h.b16 %v320
        %v782 = vunpack.c.l.b16 %v321
        %v783 = vunpack.c.h.b16 %v321
        %v784 = vunpack.c.l.b16 %v322
        %v785 = vunpack.c.h.b16 %v322
        %v786 = vunpack.c.l.b16 %v323
        %v787 = vunpack.c.h.b16 %v323
        %v788 = vunpack.c.l.b16 %v324
        %v789 = vunpack.c.h.b16 %v324
        %v790 = vunpack.c.l.b16 %v325
        %v791 = vunpack.c.h.b16 %v325
        %v792 = vunpack.c.l.b16 %v326
        %v793 = vunpack.c.h.b16 %v326
        %v794 = vunpack.c.l.b16 %v327
        %v795 = vunpack.c.h.b16 %v327
        %v796 = vunpack.c.l.b16 %v328
        %v797 = vunpack.c.h.b16 %v328
        %v798 = vunpack.c.l.b16 %v329
        %v799 = vunpack.c.h.b16 %v329
        %v800 = vunpack.c.l.b16 %v330
        %v801 = vunpack.c.h.b16 %v330
        %v802 = vunpack.c.l.b16 %v331
        %v803 = vunpack.c.h.b16 %v331
        %v804 = vunpack.c.l.b16 %v332
        %v805 = vunpack.c.h.b16 %v332
        %v806 = vunpack.c.l.b16 %v333
        %v807 = vunpack.c.h.b16 %v333
        %v808 = vunpack.c.l.b16 %v334
        %v809 = vunpack.c.h.b16 %v334
        %v810 = vunpack.c.l.b16 %v335
        %v811 = vunpack.c.h.b16 %v335
        %v812 = vunpack.c.l.b16 %v336
        %v813 = vunpack.c.h.b16 %v336
        %v814 = vunpack.c.l.b16 %v337
        %v815 = vunpack.c.h.b16 %v337
        %v816 = vunpack.c.l.b16 %v338
        %v817 = vunpack.c.h.b16 %v338
        %v818 = vunpack.c.l.b16 %v339
        %v819 = vunpack.c.h.b16 %v339
        %v820 = vunpack.c.l.b16 %v340
        %v821 = vunpack.c.h.b16 %v340
        %v822 = vunpack.c.l.b16 %v341
        %v823 = vunpack.c.h.b16 %v341
        %v824 = vunpack.c.l.b16 %v342
        %v825 = vunpack.c.h.b16 %v342
        %v826 = vunpack.c.l.b16 %v343
        %v827 = vunpack.c.h.b16 %v343
        %v828 = vunpack.c.l.b16 %v344
        %v829 = vunpack.c.h.b16 %v344
        %v830 = vunpack.c.l.b16 %v345
        %v831 = vunpack.c.h.b16 %v345
        %v832 = vunpack.c.l.b16 %v346
        %v833 = vunpack.c.h.b16 %v346
        %v834 = vunpack.c.l.b16 %v347
        %v835 = vunpack.c.h.b16 %v347
        %v836 = vunpack.c.l.b16 %v348
        %v837 = vunpack.c.h.b16 %v348
        %v838 = vunpack.c.l.b16 %v349
        %v839 = vunpack.c.h.b16 %v349
        %v840 = vunpack.c.l.b16 %v350
        %v841 = vunpack.c.h.b16 %v350
        %v842 = vunpack.c.l.b16 %v351
        %v843 = vunpack.c.h.b16 %v351
        %v844 = vpack.c.b16 %v622, %v620
        %v845 = vpack.c.b16 %v623, %v621
        %v846 = vpack.c.b16 %v626, %v624
        %v847 = vpack.c.b16 %v627, %v625
        %v848 = vpack.c.b16 %v630, %v628
        %v849 = vpack.c.b16 %v631, %v629
        %v850 = vpack.c.b16 %v634, %v632
        %v851 = vpack.c.b16 %v635, %v633
        %v852 = vpack.c.b16 %v638, %v636
        %v853 = vpack.c.b16 %v639, %v637
        %v854 = vpack.c.b16 %v642, %v640
        %v855 = vpack.c.b16 %v643, %v641
        %v856 = vpack.c.b16 %v646, %v644
        %v857 = vpack.c.b16 %v647, %v645
        %v858 = vpack.c.b16 %v650, %v648
        %v859 = vpack.c.b16 %v651, %v649
        %v860 = vpack.c.b16 %v654, %v652
        %v861 = vpack.c.b16 %v655, %v653
        %v862 = vpack.c.b16 %v658, %v656
        %v863 = vpack.c.b16 %v659, %v657
        %v864 = vpack.c.b16 %v662, %v660
        %v865 = vpack.c.b16 %v663, %v661
        %v866 = vpack.c.b16 %v666, %v664
        %v867 = vpack.c.b16 %v667, %v665
        %v868 = vpack.c.b16 %v670, %v668
        %v869 = vpack.c.b16 %v671, %v669
        %v870 = vpack.c.b16 %v674, %v672
        %v871 = vpack.c.b16 %v675, %v673
        %v872 = vpack.c.b16 %v678, %v676
        %v873 = vpack.c.b16 %v679, %v677
        %v874 = vpack.c.b16 %v682, %v680
        %v875 = vpack.c.b16 %v683, %v681
        %v876 = vpack.c.b16 %v686, %v684
        %v877 = vpack.c.b16 %v687, %v685
        %v878 = vpack.c.b16 %v690, %v688
        %v879 = vpack.c.b16 %v691, %v689
        %v880 = vpack.c.b16 %v694, %v692
        %v881 = vpack.c.b16 %v695, %v693
        %v882 = vpack.c.b16 %v698, %v696
        %v883 = vpack.c.b16 %v699, %v697
        %v884 = vpack.c.b16 %v702, %v700
        %v885 = vpack.c.b16 %v703, %v701
        %v886 = vpack.c.b16 %v706, %v704
        %v887 = vpack.c.b16 %v707, %v705
        %v888 = vpack.c.b16 %v710, %v708
        %v889 = vpack.c.b16 %v711, %v709
        %v890 = vpack.c.b16 %v714, %v712
        %v891 = vpack.c.b16 %v715, %v713
        %v892 = vpack.c.b16 %v718, %v716
        %v893 = vpack.c.b16 %v719, %v717
        %v894 = vpack.c.b16 %v722, %v720
        %v895 = vpack.c.b16 %v723, %v721
        %v896 = vpack.c.b16 %v726, %v724
        %v897 = vpack.c.b16 %v727, %v725
        %v898 = vpack.c.b16 %v730, %v728
        %v899 = vpack.c.b16 %v731, %v729
        %v900 = vpack.c.b16 %v734, %v732
        %v901 = vpack.c.b16 %v735, %v733
        %v902 = vpack.c.b16 %v738, %v736
        %v903 = vpack.c.b16 %v739, %v737
        %v904 = vpack.c.b16 %v742, %v740
        %v905 = vpack.c.b16 %v743, %v741
        %v906 = vpack.c.b16 %v746, %v744
        %v907 = vpack.c.b16 %v747, %v745
        %v908 = vpack.c.b16 %v750, %v748
        %v909 = vpack.c.b16 %v751, %v749
        %v910 = vpack.c.b16 %v754, %v752
        %v911 = vpack.c.b16 %v755, %v753
        %v912 = vpack.c.b16 %v758, %v756
        %v913 = vpack.c.b16 %v759, %v757
        %v914 = vpack.c.b16 %v762, %v760
        %v915 = vpack.c.b16 %v763, %v761
        %v916 = vpack.c.b16 %v766, %v764
        %v917 = vpack.c.b16 %v767, %v765
        %v918 = vpack.c.b16 %v770, %v768
        %v919 = vpack.c.b16 %v771, %v769
        %v920 = vpack.c.b16 %v774, %v772
        %v921 = vpack.c.b16 %v775, %v773
        %v922 = vpack.c.b16 %v778, %v776
        %v923 = vpack.c.b16 %v779, %v777
        %v924 = vpack.c.b16 %v782, %v780
        %v925 = vpack.c.b16 %v783, %v781
        %v926 = vpack.c.b16 %v786, %v784
        %v927 = vpack.c.b16 %v787, %v785
        %v928 = vpack.c.b16 %v790, %v788
        %v929 = vpack.c.b16 %v791, %v789
        %v930 = vpack.c.b16 %v794, %v792
        %v931 = vpack.c.b16 %v795, %v793
        %v932 = vpack.c.b16 %v798, %v796
        %v933 = vpack.c.b16 %v799, %v797
        %v934 = vpack.c.b16 %v802, %v800
        %v935 = vpack.c.b16 %v803, %v801
        %v936 = vpack.c.b16 %v806, %v804
        %v937 = vpack.c.b16 %v807, %v805
        %v938 = vpack.c.b16 %v810, %v808
        %v939 = vpack.c.b16 %v811, %v809
        %v940 = vpack.c.b16 %v814, %v812
        %v941 = vpack.c.b16 %v815, %v813
        %v942 = vpack.c.b16 %v818, %v816
        %v943 = vpack.c.b16 %v819, %v817
        %v944 = vpack.c.b16 %v822, %v820
        %v945 = vpack.c.b16 %v823, %v821
        %v946 = vpack.c.b16 %v826, %v824
        %v947 = vpack.c.b16 %v827, %v825
        %v948 = vpack.c.b16 %v830, %v828
        %v949 = vpack.c.b16 %v831, %v829
        %v950 = vpack.c.b16 %v834, %v832
        %v951 = vpack.c.b16 %v835, %v833
        %v952 = vpack.c.b16 %v838, %v836
        %v953 = vpack.c.b16 %v839, %v837
        %v954 = vpack.c.b16 %v842, %v840
        %v955 = vpack.c.b16 %v843, %v841
        %1068 = vmatprep.subr.bf16.mxu0 %v859
        %1069 = vmatpush1.bf16.msra.mxu0 %v858
        %1070 = vmatprep.subr.bf16.mxu0 %v857
        %1071 = vmatpush1.bf16.msra.mxu0 %v856
        %1072 = vmatprep.subr.bf16.mxu0 %v855
        %1073 = vmatpush1.bf16.msra.mxu0 %v854
        %1074 = vmatprep.subr.bf16.mxu0 %v853
        %1075 = vmatpush1.bf16.msra.mxu0 %v852
        %1076 = vmatprep.subr.bf16.mxu0 %v851
        %1077 = vmatpush1.bf16.msra.mxu0 %v850
        %1078 = vmatprep.subr.bf16.mxu0 %v849
        %1079 = vmatpush1.bf16.msra.mxu0 %v848
        %1080 = vmatprep.subr.bf16.mxu0 %v847
        %1081 = vmatpush1.bf16.msra.mxu0 %v846
        %1082 = vmatprep.subr.bf16.mxu0 %v845
        %1083 = vmatpush1.bf16.msra.mxu0 %v844
        %1084 = vmatprep.subr.bf16.mxu0 %v875
        %1085 = vmatpush2.bf16.msra.mxu0 %v874
        %1086 = vmatprep.subr.bf16.mxu0 %v873
        %1087 = vmatpush2.bf16.msra.mxu0 %v872
        %1088 = vmatprep.subr.bf16.mxu0 %v871
        %1089 = vmatpush2.bf16.msra.mxu0 %v870
        %1090 = vmatprep.subr.bf16.mxu0 %v869
        %1091 = vmatpush2.bf16.msra.mxu0 %v868
        %1092 = vmatprep.subr.bf16.mxu0 %v867
        %1093 = vmatpush2.bf16.msra.mxu0 %v866
        %1094 = vmatprep.subr.bf16.mxu0 %v865
        %1095 = vmatpush2.bf16.msra.mxu0 %v864
        %1096 = vmatprep.subr.bf16.mxu0 %v863
        %1097 = vmatpush2.bf16.msra.mxu0 %v862
        %1098 = vmatprep.subr.bf16.mxu0 %v861
        %1099 = vmatpush2.bf16.msra.mxu0 %v860
        %1100 = vmatprep.mubr.bf16.mxu0 %v453
        %1101 = vmatmul.mubr.bf16.gmra.mxu0 %v452
        %v1102 = vpop.f32.mrf.mxu0
        %v1103 = vadd.f32 %v357, %v1102
        %v1104 = vpop.f32.mrf.mxu0
        %v1105 = vadd.f32 %v361, %v1104
        %v1106 = vpop.f32.mrf.mxu0
        %v1107 = vadd.f32 %v357, %v1106
        %v1108 = vpop.f32.mrf.mxu0
        %v1109 = vadd.f32 %v361, %v1108
        %1110 = vmatprep.mubr.bf16.mxu0 %v460
        %1111 = vmatmul.mubr.bf16.gmra.mxu0 %v459
        %v1112 = vpop.f32.mrf.mxu0
        %v1113 = vadd.f32 %v357, %v1112
        %v1114 = vpop.f32.mrf.mxu0
        %v1115 = vadd.f32 %v361, %v1114
        %v1116 = vpop.f32.mrf.mxu0
        %v1117 = vadd.f32 %v357, %v1116
        %v1118 = vpop.f32.mrf.mxu0
        %v1119 = vadd.f32 %v361, %v1118
        %1120 = vmatprep.mubr.bf16.mxu0 %v467
        %1121 = vmatmul.mubr.bf16.gmra.mxu0 %v466
        %v1122 = vpop.f32.mrf.mxu0
        %v1123 = vadd.f32 %v357, %v1122
        %v1124 = vpop.f32.mrf.mxu0
        %v1125 = vadd.f32 %v361, %v1124
        %v1126 = vpop.f32.mrf.mxu0
        %v1127 = vadd.f32 %v357, %v1126
        %v1128 = vpop.f32.mrf.mxu0
        %v1129 = vadd.f32 %v361, %v1128
        %1130 = vmatprep.mubr.bf16.mxu0 %v474
        %1131 = vmatmul.mubr.bf16.gmra.mxu0 %v473
        %v1132 = vpop.f32.mrf.mxu0
        %v1133 = vadd.f32 %v357, %v1132
        %v1134 = vpop.f32.mrf.mxu0
        %v1135 = vadd.f32 %v361, %v1134
        %v1136 = vpop.f32.mrf.mxu0
        %v1137 = vadd.f32 %v357, %v1136
        %v1138 = vpop.f32.mrf.mxu0
        %v1139 = vadd.f32 %v361, %v1138
        %1140 = vdwg.mxu0
        %1141 = vmatprep.subr.bf16.mxu0 %v891
        %1142 = vmatpush1.bf16.msra.mxu0 %v890
        %1143 = vmatprep.subr.bf16.mxu0 %v889
        %1144 = vmatpush1.bf16.msra.mxu0 %v888
        %1145 = vmatprep.subr.bf16.mxu0 %v887
        %1146 = vmatpush1.bf16.msra.mxu0 %v886
        %1147 = vmatprep.subr.bf16.mxu0 %v885
        %1148 = vmatpush1.bf16.msra.mxu0 %v884
        %1149 = vmatprep.subr.bf16.mxu0 %v883
        %1150 = vmatpush1.bf16.msra.mxu0 %v882
        %1151 = vmatprep.subr.bf16.mxu0 %v881
        %1152 = vmatpush1.bf16.msra.mxu0 %v880
        %1153 = vmatprep.subr.bf16.mxu0 %v879
        %1154 = vmatpush1.bf16.msra.mxu0 %v878
        %1155 = vmatprep.subr.bf16.mxu0 %v877
        %1156 = vmatpush1.bf16.msra.mxu0 %v876
        %1157 = vmatprep.subr.bf16.mxu0 %v907
        %1158 = vmatpush2.bf16.msra.mxu0 %v906
        %1159 = vmatprep.subr.bf16.mxu0 %v905
        %1160 = vmatpush2.bf16.msra.mxu0 %v904
        %1161 = vmatprep.subr.bf16.mxu0 %v903
        %1162 = vmatpush2.bf16.msra.mxu0 %v902
        %1163 = vmatprep.subr.bf16.mxu0 %v901
        %1164 = vmatpush2.bf16.msra.mxu0 %v900
        %1165 = vmatprep.subr.bf16.mxu0 %v899
        %1166 = vmatpush2.bf16.msra.mxu0 %v898
        %1167 = vmatprep.subr.bf16.mxu0 %v897
        %1168 = vmatpush2.bf16.msra.mxu0 %v896
        %1169 = vmatprep.subr.bf16.mxu0 %v895
        %1170 = vmatpush2.bf16.msra.mxu0 %v894
        %1171 = vmatprep.subr.bf16.mxu0 %v893
        %1172 = vmatpush2.bf16.msra.mxu0 %v892
        %1173 = vmatprep.mubr.bf16.mxu0 %v455
        %1174 = vmatmul.mubr.bf16.gmra.mxu0 %v454
        %v1175 = vpop.f32.mrf.mxu0
        %v1176 = vadd.f32 %v1103, %v1175
        %v1177 = vpop.f32.mrf.mxu0
        %v1178 = vadd.f32 %v1105, %v1177
        %v1179 = vpop.f32.mrf.mxu0
        %v1180 = vadd.f32 %v1107, %v1179
        %v1181 = vpop.f32.mrf.mxu0
        %v1182 = vadd.f32 %v1109, %v1181
        %1183 = vmatprep.mubr.bf16.mxu0 %v462
        %1184 = vmatmul.mubr.bf16.gmra.mxu0 %v461
        %v1185 = vpop.f32.mrf.mxu0
        %v1186 = vadd.f32 %v1113, %v1185
        %v1187 = vpop.f32.mrf.mxu0
        %v1188 = vadd.f32 %v1115, %v1187
        %v1189 = vpop.f32.mrf.mxu0
        %v1190 = vadd.f32 %v1117, %v1189
        %v1191 = vpop.f32.mrf.mxu0
        %v1192 = vadd.f32 %v1119, %v1191
        %1193 = vmatprep.mubr.bf16.mxu0 %v469
        %1194 = vmatmul.mubr.bf16.gmra.mxu0 %v468
        %v1195 = vpop.f32.mrf.mxu0
        %v1196 = vadd.f32 %v1123, %v1195
        %v1197 = vpop.f32.mrf.mxu0
        %v1198 = vadd.f32 %v1125, %v1197
        %v1199 = vpop.f32.mrf.mxu0
        %v1200 = vadd.f32 %v1127, %v1199
        %v1201 = vpop.f32.mrf.mxu0
        %v1202 = vadd.f32 %v1129, %v1201
        %1203 = vmatprep.mubr.bf16.mxu0 %v476
        %1204 = vmatmul.mubr.bf16.gmra.mxu0 %v475
        %v1205 = vpop.f32.mrf.mxu0
        %v1206 = vadd.f32 %v1133, %v1205
        %v1207 = vpop.f32.mrf.mxu0
        %v1208 = vadd.f32 %v1135, %v1207
        %v1209 = vpop.f32.mrf.mxu0
        %v1210 = vadd.f32 %v1137, %v1209
        %v1211 = vpop.f32.mrf.mxu0
        %v1212 = vadd.f32 %v1139, %v1211
        %1213 = vdwg.mxu0
        %1214 = vmatprep.subr.bf16.mxu0 %v923
        %1215 = vmatpush1.bf16.msra.mxu0 %v922
        %1216 = vmatprep.subr.bf16.mxu0 %v921
        %1217 = vmatpush1.bf16.msra.mxu0 %v920
        %1218 = vmatprep.subr.bf16.mxu0 %v919
        %1219 = vmatpush1.bf16.msra.mxu0 %v918
        %1220 = vmatprep.subr.bf16.mxu0 %v917
        %1221 = vmatpush1.bf16.msra.mxu0 %v916
        %1222 = vmatprep.subr.bf16.mxu0 %v915
        %1223 = vmatpush1.bf16.msra.mxu0 %v914
        %1224 = vmatprep.subr.bf16.mxu0 %v913
        %1225 = vmatpush1.bf16.msra.mxu0 %v912
        %1226 = vmatprep.subr.bf16.mxu0 %v911
        %1227 = vmatpush1.bf16.msra.mxu0 %v910
        %1228 = vmatprep.subr.bf16.mxu0 %v909
        %1229 = vmatpush1.bf16.msra.mxu0 %v908
        %1230 = vmatprep.subr.bf16.mxu0 %v939
        %1231 = vmatpush2.bf16.msra.mxu0 %v938
        %1232 = vmatprep.subr.bf16.mxu0 %v937
        %1233 = vmatpush2.bf16.msra.mxu0 %v936
        %1234 = vmatprep.subr.bf16.mxu0 %v935
        %1235 = vmatpush2.bf16.msra.mxu0 %v934
        %1236 = vmatprep.subr.bf16.mxu0 %v933
        %1237 = vmatpush2.bf16.msra.mxu0 %v932
        %1238 = vmatprep.subr.bf16.mxu0 %v931
        %1239 = vmatpush2.bf16.msra.mxu0 %v930
        %1240 = vmatprep.subr.bf16.mxu0 %v929
        %1241 = vmatpush2.bf16.msra.mxu0 %v928
        %1242 = vmatprep.subr.bf16.mxu0 %v927
        %1243 = vmatpush2.bf16.msra.mxu0 %v926
        %1244 = vmatprep.subr.bf16.mxu0 %v925
        %1245 = vmatpush2.bf16.msra.mxu0 %v924
        %1246 = vmatprep.mubr.bf16.mxu0 %v457
        %1247 = vmatmul.mubr.bf16.gmra.mxu0 %v456
        %v1248 = vpop.f32.mrf.mxu0
        %v1249 = vadd.f32 %v1176, %v1248
        %v1250 = vpop.f32.mrf.mxu0
        %v1251 = vadd.f32 %v1178, %v1250
        %v1252 = vpop.f32.mrf.mxu0
        %v1253 = vadd.f32 %v1180, %v1252
        %v1254 = vpop.f32.mrf.mxu0
        %v1255 = vadd.f32 %v1182, %v1254
        %1256 = vmatprep.mubr.bf16.mxu0 %v464
        %1257 = vmatmul.mubr.bf16.gmra.mxu0 %v463
        %v1258 = vpop.f32.mrf.mxu0
        %v1259 = vadd.f32 %v1186, %v1258
        %v1260 = vpop.f32.mrf.mxu0
        %v1261 = vadd.f32 %v1188, %v1260
        %v1262 = vpop.f32.mrf.mxu0
        %v1263 = vadd.f32 %v1190, %v1262
        %v1264 = vpop.f32.mrf.mxu0
        %v1265 = vadd.f32 %v1192, %v1264
        %1266 = vmatprep.mubr.bf16.mxu0 %v471
        %1267 = vmatmul.mubr.bf16.gmra.mxu0 %v470
        %v1268 = vpop.f32.mrf.mxu0
        %v1269 = vadd.f32 %v1196, %v1268
        %v1270 = vpop.f32.mrf.mxu0
        %v1271 = vadd.f32 %v1198, %v1270
        %v1272 = vpop.f32.mrf.mxu0
        %v1273 = vadd.f32 %v1200, %v1272
        %v1274 = vpop.f32.mrf.mxu0
        %v1275 = vadd.f32 %v1202, %v1274
        %1276 = vmatprep.mubr.bf16.mxu0 %v478
        %1277 = vmatmul.mubr.bf16.gmra.mxu0 %v477
        %v1278 = vpop.f32.mrf.mxu0
        %v1279 = vadd.f32 %v1206, %v1278
        %v1280 = vpop.f32.mrf.mxu0
        %v1281 = vadd.f32 %v1208, %v1280
        %v1282 = vpop.f32.mrf.mxu0
        %v1283 = vadd.f32 %v1210, %v1282
        %v1284 = vpop.f32.mrf.mxu0
        %v1285 = vadd.f32 %v1212, %v1284
        %1286 = vdwg.mxu0
        %1287 = vmatprep.subr.bf16.mxu0 %v955
        %1288 = vmatpush1.bf16.msra.mxu0 %v954
        %1289 = vmatprep.subr.bf16.mxu0 %v953
        %1290 = vmatpush1.bf16.msra.mxu0 %v952
        %1291 = vmatprep.subr.bf16.mxu0 %v951
        %1292 = vmatpush1.bf16.msra.mxu0 %v950
        %1293 = vmatprep.subr.bf16.mxu0 %v949
        %1294 = vmatpush1.bf16.msra.mxu0 %v948
        %1295 = vmatprep.subr.bf16.mxu0 %v947
        %1296 = vmatpush1.bf16.msra.mxu0 %v946
        %1297 = vmatprep.subr.bf16.mxu0 %v945
        %1298 = vmatpush1.bf16.msra.mxu0 %v944
        %1299 = vmatprep.subr.bf16.mxu0 %v943
        %1300 = vmatpush1.bf16.msra.mxu0 %v942
        %1301 = vmatprep.subr.bf16.mxu0 %v941
        %1302 = vmatpush1.bf16.msra.mxu0 %v940
        %1303 = vmatprep.subr.bf16.mxu0 0
        %1304 = vmatpush2.bf16.msra.mxu0 0
        %1305 = vmatprep.subr.bf16.mxu0 0
        %1306 = vmatpush2.bf16.msra.mxu0 0
        %1307 = vmatprep.subr.bf16.mxu0 0
        %1308 = vmatpush2.bf16.msra.mxu0 0
        %1309 = vmatprep.subr.bf16.mxu0 0
        %1310 = vmatpush2.bf16.msra.mxu0 0
        %1311 = vmatprep.subr.bf16.mxu0 0
        %1312 = vmatpush2.bf16.msra.mxu0 0
        %1313 = vmatprep.subr.bf16.mxu0 0
        %1314 = vmatpush2.bf16.msra.mxu0 0
        %1315 = vmatprep.subr.bf16.mxu0 0
        %1316 = vmatpush2.bf16.msra.mxu0 0
        %1317 = vmatprep.subr.bf16.mxu0 0
        %1318 = vmatpush2.bf16.msra.mxu0 0
        %1319 = vmatprep.mubr.bf16.mxu0 0
        %1320 = vmatmul.mubr.bf16.gmra.mxu0 %v458
        %v1321 = vpop.f32.mrf.mxu0
        %v1322 = vadd.f32 %v1249, %v1321
        %v1323 = vpop.f32.mrf.mxu0
        %v1324 = vadd.f32 %v1251, %v1323
        %v1325 = vpop.f32.mrf.mxu0
        %v1326 = vadd.f32 %v1253, %v1325
        %v1327 = vpop.f32.mrf.mxu0
        %v1328 = vadd.f32 %v1255, %v1327
        %1329 = vmatprep.mubr.bf16.mxu0 0
        %1330 = vmatmul.mubr.bf16.gmra.mxu0 %v465
        %v1331 = vpop.f32.mrf.mxu0
        %v1332 = vadd.f32 %v1259, %v1331
        %v1333 = vpop.f32.mrf.mxu0
        %v1334 = vadd.f32 %v1261, %v1333
        %v1335 = vpop.f32.mrf.mxu0
        %v1336 = vadd.f32 %v1263, %v1335
        %v1337 = vpop.f32.mrf.mxu0
        %v1338 = vadd.f32 %v1265, %v1337
        %1339 = vmatprep.mubr.bf16.mxu0 0
        %1340 = vmatmul.mubr.bf16.gmra.mxu0 %v472
        %v1341 = vpop.f32.mrf.mxu0
        %v1342 = vadd.f32 %v1269, %v1341
        %v1343 = vpop.f32.mrf.mxu0
        %v1344 = vadd.f32 %v1271, %v1343
        %v1345 = vpop.f32.mrf.mxu0
        %v1346 = vadd.f32 %v1273, %v1345
        %v1347 = vpop.f32.mrf.mxu0
        %v1348 = vadd.f32 %v1275, %v1347
        %1349 = vmatprep.mubr.bf16.mxu0 0
        %1350 = vmatmul.mubr.bf16.gmra.mxu0 %v479
        %v1351 = vpop.f32.mrf.mxu0
        %v1352 = vadd.f32 %v1279, %v1351
        %v1353 = vpop.f32.mrf.mxu0
        %v1354 = vadd.f32 %v1281, %v1353
        %v1355 = vpop.f32.mrf.mxu0
        %v1356 = vadd.f32 %v1283, %v1355
        %v1357 = vpop.f32.mrf.mxu0
        %v1358 = vadd.f32 %v1285, %v1357
        %1359 = vdwg.mxu0
        %1360 = vst [vmem:[%s204] sm:$0xff] %v1322
        %1361 = vst [vmem:[%s204 + $0x8] sm:$0xff] %v1324
        %1362 = vst [vmem:[%s204 + $0x10] sm:$0xff] %v1326
        %1363 = vst [vmem:[%s204 + $0x18] sm:$0xff] %v1328
        %1364 = vst [vmem:[%s204 + $0x20] sm:$0xff] %v1332
        %1365 = vst [vmem:[%s204 + $0x28] sm:$0xff] %v1334
        %1366 = vst [vmem:[%s204 + $0x30] sm:$0xff] %v1336
        %1367 = vst [vmem:[%s204 + $0x38] sm:$0xff] %v1338
        %1368 = vst [vmem:[%s204 + $0x40] sm:$0xff] %v1342
        %1369 = vst [vmem:[%s204 + $0x48] sm:$0xff] %v1344
        %1370 = vst [vmem:[%s204 + $0x50] sm:$0xff] %v1346
        %1371 = vst [vmem:[%s204 + $0x58] sm:$0xff] %v1348
        %1372 = vst [vmem:[%s204 + $0x60] sm:$0xff] %v1352
        %1373 = vst [vmem:[%s204 + $0x68] sm:$0xff] %v1354
        %1374 = vst [vmem:[%s204 + $0x70] sm:$0xff] %v1356
        %1375 = vst [vmem:[%s204 + $0x78] sm:$0xff] %v1358
        %s1376 = sand.u32 %s97, 1
        %s1377 = scalar_lea.sflag [#allocation4], %s1376
        %s1378 = sand.u32 %s97, 1
        %s1379 = smul.addr %s1378, 128
        %s1380 = scalar_lea.vmem [#allocation7], %s1379
        // Predicated region
        $region41: #{tpu_custom_call.1} parent=31 // pred_check
          %p1381 = pneg %p107
        $region42: #{tpu_custom_call.1} parent=31 // pred_check_branch
          %1383 = sbr.rel (%p1381) target = $region44
        $region43: #{tpu_custom_call.1} parent=31 // pred_region
          %s1384 = smul.u32 8, %s21
          %s1386 = ssub.s32 2048, 2048
          %1387 = vsyncadd %s1377, %s1386
          %s1388 = smul.addr %s1384, 2
          %s1389 = smul.addr %s1388, 128
          %s1390 = scalar_lea.hbm %s3, %s1389
          %s1391 = sshll.u32 %s1380, 4
          %s1392 = int_to_ptr.vmem [resolvable:$true] %s1391
          %1397 = dma.vmem_to_hbm [thread:$0]  %s1392, 2048, %s1390, %s1377, 256, 256, 16
        $region44: #{tpu_custom_call.1} parent=31 // pred_fallthru
          _
      $region32: #{tpu_custom_call.1} parent=5 // pred_fallthru
        _
      %p1398 = scmp.le.s32.totalorder 2, %s16
      // Predicated region
      $region45: #{tpu_custom_call.1} parent=5 // pred_check
        %p1399 = pneg %p1398
      $region46: #{tpu_custom_call.1} parent=5 // pred_check_branch
        %1401 = sbr.rel (%p1399) target = $region48
      $region47: #{tpu_custom_call.1} parent=5 // pred_region
        %s1402 = ssub.s32 %s16, 2
        // Predicated region
        $region49: #{tpu_custom_call.1} parent=47 // pred_check
          %p1403 = pneg %p113
        $region50: #{tpu_custom_call.1} parent=47 // pred_check_branch
          %1405 = sbr.rel (%p1403) target = $region52
        $region51: #{tpu_custom_call.1} parent=47 // pred_region
          %s1406 = sand.u32 %s98, 1
          %s1407 = scalar_lea.sflag [#allocation4], %s1406
          %s1408 = sand.u32 %s98, 1
          %s1409 = smul.addr %s1408, 128
          %s1410 = scalar_lea.vmem [#allocation7], %s1409
          %1411 = dma.done %s1407, 2048
        $region52: #{tpu_custom_call.1} parent=47 // pred_fallthru
          _
      $region48: #{tpu_custom_call.1} parent=5 // pred_fallthru
        _
    $region6: #{tpu_custom_call.1} parent=1 // loop_footer
      %s20 = sadd.s32 1, %s16
    $region7: #{tpu_custom_call.1} parent=1 // loop_footer_branch
      %15 = sbr.rel target = $region3
    $region8: #{tpu_custom_call.1} parent=1 // loop_exit
      _
    %1412 = vsyncpa [#allocation3], 1
    %s1413 = scalar_lea.sflag [#allocation3], 1
    %1414 = vsyncpa %s1413, 1
    %1415 = vsyncpa [#allocation6], 1
    %1416 = vsyncpa [#allocation4], 1
    %s1417 = scalar_lea.sflag [#allocation4], 1
    %1418 = vsyncpa %s1417, 1

</llo_original>
